<compile_context>
chip_gen: v5e
topology: v5e:2x2
jax: 0.10.0
libtpu: 0.0.40
codegen_flags: <defaults>
</compile_context>

<pallas_src>
import math
import functools

import jax
import jax.numpy as jnp
from jax.experimental import pallas as pl
from jax.experimental.pallas import tpu as pltpu


def _round_up(n: int, m: int) -> int:
    return ((n + m - 1) // m) * m


def _pick_bm(B: int) -> int:
    """Largest-tile / least-padding batch tile from {8,...,256}."""
    best, best_waste = 8, (-B) % 8
    for c in (8, 16, 32, 64, 128, 256):
        waste = (-B) % c
        if waste < best_waste or (waste == best_waste and c > best):
            best, best_waste = c, waste
    return best


def _noisy_linear_train_kernel(x_ref, xe_ref, wmu_ref, wsig_ref, eout_ref,
                               bmu_ref, bsig_ref, o_ref, acc_mu_ref, acc_sig_ref):
    """acc_mu += x@Wmu ; acc_sig += (x*eps_in)@Wsig ; finalize with eps_out & bias."""
    k = pl.program_id(2)

    @pl.when(k == 0)
    def _init():
        acc_mu_ref[...] = jnp.zeros_like(acc_mu_ref)
        acc_sig_ref[...] = jnp.zeros_like(acc_sig_ref)

    # Both matmuls feed the MXU directly from the (bf16) VMEM tiles; no VPU work
    # on weight-sized data anywhere in the hot loop.
    acc_mu_ref[...] += jnp.dot(x_ref[...], wmu_ref[...],
                               preferred_element_type=jnp.float32)
    acc_sig_ref[...] += jnp.dot(xe_ref[...], wsig_ref[...],
                                preferred_element_type=jnp.float32)

    @pl.when(k == pl.num_programs(2) - 1)
    def _finalize():
        eout = eout_ref[...]                                     # (1, bn) f32
        bias = bmu_ref[...] + bsig_ref[...] * eout               # (1, bn) f32
        o_ref[...] = (acc_mu_ref[...] + acc_sig_ref[...] * eout
                      + bias).astype(o_ref.dtype)


def _linear_eval_kernel(x_ref, wmu_ref, bmu_ref, o_ref, acc_ref):
    """Eval-mode tile: plain x @ Wmu + bias_mu."""
    k = pl.program_id(2)

    @pl.when(k == 0)
    def _init():
        acc_ref[...] = jnp.zeros_like(acc_ref)

    acc_ref[...] += jnp.dot(x_ref[...], wmu_ref[...],
                            preferred_element_type=jnp.float32)

    @pl.when(k == pl.num_programs(2) - 1)
    def _finalize():
        o_ref[...] = (acc_ref[...] + bmu_ref[...]).astype(o_ref.dtype)


def pack_noisy_linear_params(params, in_features, out_features,
                             compute_dtype=jnp.bfloat16,
                             bk_cap=512, bn_cap=512):
    """One-time prep: transpose weights to (in,out), pad to tile multiples, cast.

    Weights are streamed in `compute_dtype` (bf16 by default) from HBM; bias and
    the factorized noise vectors stay f32 (they are tiny and used on the VPU).
    The (out,in) PyTorch layout is transposed here exactly once so the kernel
    computes x @ W with no in-kernel transpose.
    """
    bk = min(bk_cap, _round_up(in_features, 128))
    bn = min(bn_cap, _round_up(out_features, 128))
    in_p = _round_up(in_features, bk)
    out_p = _round_up(out_features, bn)

    f32 = jnp.float32
    wmu = jnp.pad(params["weight_mu"].astype(f32).T,
                  ((0, in_p - in_features), (0, out_p - out_features)))
    wsig = jnp.pad(params["weight_sigma"].astype(f32).T,
                   ((0, in_p - in_features), (0, out_p - out_features)))
    bmu = jnp.pad(params["bias_mu"].astype(f32),
                  (0, out_p - out_features)).reshape(1, out_p)
    bsig = jnp.pad(params["bias_sigma"].astype(f32),
                   (0, out_p - out_features)).reshape(1, out_p)
    ein = jnp.pad(params["eps_in"].astype(f32),
                  (0, in_p - in_features)).reshape(1, in_p)
    eout = jnp.pad(params["eps_out"].astype(f32),
                   (0, out_p - out_features)).reshape(1, out_p)

    return {
        "weight_mu": wmu.astype(compute_dtype),     # (in_p, out_p)
        "weight_sigma": wsig.astype(compute_dtype),  # (in_p, out_p)
        "bias_mu": bmu,                              # (1, out_p) f32
        "bias_sigma": bsig,                          # (1, out_p) f32
        "eps_in": ein,                               # (1, in_p)  f32
        "eps_out": eout,                             # (1, out_p) f32 (== bias_epsilon)
    }


@functools.partial(jax.jit, static_argnames=("out_features", "training"))
def noisy_linear_forward(x, packed, out_features, training=True):
    """Pallas implementation of NoisyLinear.forward.

    x:      (B, in_features) float32.
    packed: output of pack_noisy_linear_params (padded, (in,out)-layout weights).
    """
    B, in_f = x.shape
    in_p, out_p = packed["weight_mu"].shape
    assert in_f <= in_p
    compute_dtype = packed["weight_mu"].dtype

    bm = _pick_bm(B)
    B_p = _round_up(B, bm)
    bk = min(512, in_p)     # in_p was padded to a multiple of this at pack time
    bn = min(512, out_p)

    # Only the activations are padded per call (B x in, tiny); the weight pad /
    # cast / transpose happened once at pack time.
    x_f32 = x.astype(jnp.float32)
    x_pad = jnp.pad(x_f32, ((0, B_p - B), (0, in_p - in_f)))
    x_c = x_pad.astype(compute_dtype)

    grid = (B_p // bm, out_p // bn, in_p // bk)
    out_shape = jax.ShapeDtypeStruct((B_p, out_p), x.dtype)

    x_spec = pl.BlockSpec((bm, bk), lambda i, j, k: (i, k))
    w_spec = pl.BlockSpec((bk, bn), lambda i, j, k: (k, j))
    row_spec = pl.BlockSpec((1, bn), lambda i, j, k: (0, j))   # bias / eps_out rows
    out_spec = pl.BlockSpec((bm, bn), lambda i, j, k: (i, j))

    compiler_params = pltpu.CompilerParams(
        dimension_semantics=("parallel", "parallel", "arbitrary"),
        # Double-buffered bf16 weight streams at (512,512) tiles are ~4 MiB; 48 MiB
        # leaves headroom for bigger tiles while fitting v7x's 64 MiB physical VMEM.
        vmem_limit_bytes=48 * 1024 * 1024,
    )

    if training:
        # Fold eps_in into x once in the wrapper (O(B*in) f32 VPU work, then one
        # cast) instead of broadcasting a (bk,1) column against weight tiles.
        xe_c = (x_pad * packed["eps_in"]).astype(compute_dtype)
        y = pl.pallas_call(
            _noisy_linear_train_kernel,
            out_shape=out_shape,
            grid_spec=pltpu.PrefetchScalarGridSpec(
                num_scalar_prefetch=0,
                grid=grid,
                in_specs=[x_spec, x_spec, w_spec, w_spec,
                          row_spec, row_spec, row_spec],
                out_specs=out_spec,
                scratch_shapes=[pltpu.VMEM((bm, bn), jnp.float32),
                                pltpu.VMEM((bm, bn), jnp.float32)],
            ),
            compiler_params=compiler_params,
        )(x_c, xe_c, packed["weight_mu"], packed["weight_sigma"],
          packed["eps_out"], packed["bias_mu"], packed["bias_sigma"])
    else:
        y = pl.pallas_call(
            _linear_eval_kernel,
            out_shape=out_shape,
            grid_spec=pltpu.PrefetchScalarGridSpec(
                num_scalar_prefetch=0,
                grid=grid,
                in_specs=[x_spec, w_spec, row_spec],
                out_specs=out_spec,
                scratch_shapes=[pltpu.VMEM((bm, bn), jnp.float32)],
            ),
            compiler_params=compiler_params,
        )(x_c, packed["weight_mu"], packed["bias_mu"])

    return y[:B, :out_features]


def _scale_noise(key, size):
    # torch: x = randn(size); x.sign() * sqrt(|x|)
    x = jax.random.normal(key, (size,), dtype=jnp.float32)
    return jnp.sign(x) * jnp.sqrt(jnp.abs(x))


def init_noisy_linear(key, in_features, out_features, sigma_init=0.2):
    """Parameter + factorized-noise init mirroring the PyTorch module.

    Weights use the PyTorch (out_features, in_features) layout; the forward-ready
    (transposed, padded, bf16) copies are built once by pack_noisy_linear_params.
    weight_epsilon = outer(eps_out, eps_in) is never materialized; bias_epsilon
    == eps_out, exactly as in reset_noise().
    """
    k_wmu, k_bmu, k_ein, k_eout = jax.random.split(key, 4)
    mu_range = 1.0 / math.sqrt(in_features)

    weight_mu = jax.random.uniform(
        k_wmu, (out_features, in_features),
        minval=-mu_range, maxval=mu_range, dtype=jnp.float32)
    weight_sigma = jnp.full((out_features, in_features), sigma_init, jnp.float32)
    bias_mu = jax.random.uniform(
        k_bmu, (out_features,), minval=-mu_range, maxval=mu_range,
        dtype=jnp.float32)
    bias_sigma = jnp.full((out_features,), sigma_init, jnp.float32)

    eps_in = _scale_noise(k_ein, in_features)
    eps_out = _scale_noise(k_eout, out_features)

    return {
        "weight_mu": weight_mu,
        "weight_sigma": weight_sigma,
        "bias_mu": bias_mu,
        "bias_sigma": bias_sigma,
        "eps_in": eps_in,
        "eps_out": eps_out,   # == bias_epsilon in the PyTorch module
    }


if __name__ == "__main__":
    key = jax.random.PRNGKey(0)
    k_param, k_x = jax.random.split(key)

    B, in_features, out_features = 8, 32, 64
    params = init_noisy_linear(k_param, in_features, out_features, sigma_init=0.2)
    packed_bf16 = pack_noisy_linear_params(params, in_features, out_features)
    packed_f32 = pack_noisy_linear_params(params, in_features, out_features,
                                          compute_dtype=jnp.float32)
    x = jax.random.normal(k_x, (B, in_features), dtype=jnp.float32)

    # Training-mode forward: bf16 weight stream (default) and exact-f32 path.
    y_train = noisy_linear_forward(x, packed_bf16, out_features, training=True)
    y_train_f32 = noisy_linear_forward(x, packed_f32, out_features, training=True)
    # Eval-mode forward (mu only).
    y_eval = noisy_linear_forward(x, packed_bf16, out_features, training=False)
    jax.block_until_ready((y_train, y_train_f32, y_eval))

    # Pure-JAX references in the original PyTorch layout.
    wmu_t, wsig_t = params["weight_mu"], params["weight_sigma"]   # (out, in)
    bmu, bsig = params["bias_mu"], params["bias_sigma"]
    ein, eout = params["eps_in"], params["eps_out"]
    w_eps = jnp.outer(eout, ein)                                  # weight_epsilon
    w_noisy = wmu_t + wsig_t * w_eps
    b_noisy = bmu + bsig * eout
    ref_train_f32 = x @ w_noisy.T + b_noisy
    ref_eval_f32 = x @ wmu_t.T + bmu

    def bf16_dot(a, w):
        return jnp.dot(a.astype(jnp.bfloat16), w.astype(jnp.bfloat16),
                       preferred_element_type=jnp.float32)

    # Matched-precision references for the restructured bf16 path.
    ref_train_bf16 = (bf16_dot(x, wmu_t.T)
                      + bf16_dot(x * ein, wsig_t.T) * eout
                      + b_noisy)
    ref_eval_bf16 = bf16_dot(x, wmu_t.T) + bmu

    assert y_train.shape == (B, out_features)
    assert y_eval.shape == (B, out_features)
    # Exact-f32 kernel path vs f32 reference (restructure is algebraically equal).
    assert jnp.allclose(y_train_f32, ref_train_f32, atol=1e-4, rtol=1e-4)
    # bf16 MXU path vs matched-precision reference (tight) and f32 ref (loose).
    assert jnp.allclose(y_train, ref_train_bf16, atol=2e-3, rtol=2e-3)
    assert jnp.allclose(y_train, ref_train_f32, atol=5e-2, rtol=5e-2)
    assert jnp.allclose(y_eval, ref_eval_bf16, atol=2e-3, rtol=2e-3)
    assert jnp.allclose(y_eval, ref_eval_f32, atol=5e-2, rtol=5e-2)

    print("KERNEL_OK")
</pallas_src>

<mosaic_0001>
module attributes {stable_mosaic.version = 11 : i64} {
  func.func @_noisy_linear_train_kernel(%arg0: i32, %arg1: i32, %arg2: i32, %arg3: memref<8x128xbf16, #tpu.memory_space<vmem>>, %arg4: memref<8x128xbf16, #tpu.memory_space<vmem>>, %arg5: memref<128x128xbf16, #tpu.memory_space<vmem>>, %arg6: memref<128x128xbf16, #tpu.memory_space<vmem>>, %arg7: memref<1x128xf32, #tpu.memory_space<vmem>>, %arg8: memref<1x128xf32, #tpu.memory_space<vmem>>, %arg9: memref<1x128xf32, #tpu.memory_space<vmem>>, %arg10: memref<8x128xf32, #tpu.memory_space<vmem>>, %arg11: memref<8x128xf32, #tpu.memory_space<vmem>>, %arg12: memref<8x128xf32, #tpu.memory_space<vmem>>) attributes {dimension_semantics = [#tpu.dimension_semantics<parallel>, #tpu.dimension_semantics<parallel>, #tpu.dimension_semantics<arbitrary>], iteration_bounds = array<i64: 1, 1, 1>, scalar_prefetch = 0 : i64, scratch_operands = 2 : i64, tpu.core_type = #tpu.core_type<tc>, window_params = [{transform_indices = @transform_0, window_bounds = array<i64: 8, 128>}, {transform_indices = @transform_1, window_bounds = array<i64: 8, 128>}, {transform_indices = @transform_2, window_bounds = array<i64: 128, 128>}, {transform_indices = @transform_3, window_bounds = array<i64: 128, 128>}, {transform_indices = @transform_4, window_bounds = array<i64: 1, 128>}, {transform_indices = @transform_5, window_bounds = array<i64: 1, 128>}, {transform_indices = @transform_6, window_bounds = array<i64: 1, 128>}, {transform_indices = @transform_7, window_bounds = array<i64: 8, 128>}]} {
    %c0_i32 = arith.constant 0 : i32
    %0 = arith.cmpi eq, %arg2, %c0_i32 : i32
    %1 = arith.extui %0 : i1 to i32
    %c0_i32_0 = arith.constant 0 : i32
    %2 = arith.cmpi ne, %1, %c0_i32_0 : i32
    scf.if %2 {
      %cst_19 = arith.constant 0.000000e+00 : f32
      %18 = vector.broadcast %cst_19 : f32 to vector<8x128xf32>
      %c0_20 = arith.constant 0 : index
      %c0_21 = arith.constant 0 : index
      %19 = vector.load %arg11[%c0_20, %c0_21] : memref<8x128xf32, #tpu.memory_space<vmem>>, vector<8x128xf32>
      tpu.vector_store %arg11[%c0_20, %c0_21], %18 {strides = array<i32>} : memref<8x128xf32, #tpu.memory_space<vmem>>, vector<8x128xf32>,
      %cst_22 = arith.constant 0.000000e+00 : f32
      %20 = vector.broadcast %cst_22 : f32 to vector<8x128xf32>
      %c0_23 = arith.constant 0 : index
      %c0_24 = arith.constant 0 : index
      %21 = vector.load %arg12[%c0_23, %c0_24] : memref<8x128xf32, #tpu.memory_space<vmem>>, vector<8x128xf32>
      tpu.vector_store %arg12[%c0_23, %c0_24], %20 {strides = array<i32>} : memref<8x128xf32, #tpu.memory_space<vmem>>, vector<8x128xf32>,
    } else {
    }
    %c0 = arith.constant 0 : index
    %c0_1 = arith.constant 0 : index
    %3 = vector.load %arg11[%c0, %c0_1] : memref<8x128xf32, #tpu.memory_space<vmem>>, vector<8x128xf32>
    %c0_2 = arith.constant 0 : index
    %c0_3 = arith.constant 0 : index
    %4 = vector.load %arg3[%c0_2, %c0_3] : memref<8x128xbf16, #tpu.memory_space<vmem>>, vector<8x128xbf16>
    %c0_4 = arith.constant 0 : index
    %c0_5 = arith.constant 0 : index
    %5 = vector.load %arg5[%c0_4, %c0_5] : memref<128x128xbf16, #tpu.memory_space<vmem>>, vector<128x128xbf16>
    %cst = arith.constant dense<0.000000e+00> : vector<8x128xf32>
    %6 = tpu.matmul %4, %5, %cst {dimension_numbers = #tpu.dot_dimension_numbers<[1], [0], [0], [1], [0, 0, 1, 1], [], []>} : vector<8x128xbf16>, vector<128x128xbf16>, vector<8x128xf32> -> vector<8x128xf32>
    %7 = arith.addf %3, %6 : vector<8x128xf32>
    %c0_6 = arith.constant 0 : index
    %c0_7 = arith.constant 0 : index
    %8 = vector.load %arg11[%c0_6, %c0_7] : memref<8x128xf32, #tpu.memory_space<vmem>>, vector<8x128xf32>
    tpu.vector_store %arg11[%c0_6, %c0_7], %7 {strides = array<i32>} : memref<8x128xf32, #tpu.memory_space<vmem>>, vector<8x128xf32>,
    %c0_8 = arith.constant 0 : index
    %c0_9 = arith.constant 0 : index
    %9 = vector.load %arg12[%c0_8, %c0_9] : memref<8x128xf32, #tpu.memory_space<vmem>>, vector<8x128xf32>
    %c0_10 = arith.constant 0 : index
    %c0_11 = arith.constant 0 : index
    %10 = vector.load %arg4[%c0_10, %c0_11] : memref<8x128xbf16, #tpu.memory_space<vmem>>, vector<8x128xbf16>
    %c0_12 = arith.constant 0 : index
    %c0_13 = arith.constant 0 : index
    %11 = vector.load %arg6[%c0_12, %c0_13] : memref<128x128xbf16, #tpu.memory_space<vmem>>, vector<128x128xbf16>
    %cst_14 = arith.constant dense<0.000000e+00> : vector<8x128xf32>
    %12 = tpu.matmul %10, %11, %cst_14 {dimension_numbers = #tpu.dot_dimension_numbers<[1], [0], [0], [1], [0, 0, 1, 1], [], []>} : vector<8x128xbf16>, vector<128x128xbf16>, vector<8x128xf32> -> vector<8x128xf32>
    %13 = arith.addf %9, %12 : vector<8x128xf32>
    %c0_15 = arith.constant 0 : index
    %c0_16 = arith.constant 0 : index
    %14 = vector.load %arg12[%c0_15, %c0_16] : memref<8x128xf32, #tpu.memory_space<vmem>>, vector<8x128xf32>
    tpu.vector_store %arg12[%c0_15, %c0_16], %13 {strides = array<i32>} : memref<8x128xf32, #tpu.memory_space<vmem>>, vector<8x128xf32>,
    %c0_i32_17 = arith.constant 0 : i32
    %15 = arith.cmpi eq, %arg2, %c0_i32_17 : i32
    %16 = arith.extui %15 : i1 to i32
    %c0_i32_18 = arith.constant 0 : i32
    %17 = arith.cmpi ne, %16, %c0_i32_18 : i32
    scf.if %17 {
      %c0_19 = arith.constant 0 : index
      %c0_20 = arith.constant 0 : index
      %18 = vector.load %arg7[%c0_19, %c0_20] : memref<1x128xf32, #tpu.memory_space<vmem>>, vector<1x128xf32>
      %c0_21 = arith.constant 0 : index
      %c0_22 = arith.constant 0 : index
      %19 = vector.load %arg8[%c0_21, %c0_22] : memref<1x128xf32, #tpu.memory_space<vmem>>, vector<1x128xf32>
      %c0_23 = arith.constant 0 : index
      %c0_24 = arith.constant 0 : index
      %20 = vector.load %arg9[%c0_23, %c0_24] : memref<1x128xf32, #tpu.memory_space<vmem>>, vector<1x128xf32>
      %21 = arith.mulf %20, %18 : vector<1x128xf32>
      %22 = arith.addf %19, %21 : vector<1x128xf32>
      %c0_25 = arith.constant 0 : index
      %c0_26 = arith.constant 0 : index
      %23 = vector.load %arg11[%c0_25, %c0_26] : memref<8x128xf32, #tpu.memory_space<vmem>>, vector<8x128xf32>
      %c0_27 = arith.constant 0 : index
      %c0_28 = arith.constant 0 : index
      %24 = vector.load %arg12[%c0_27, %c0_28] : memref<8x128xf32, #tpu.memory_space<vmem>>, vector<8x128xf32>
      %25 = vector.broadcast %18 : vector<1x128xf32> to vector<8x128xf32>
      %26 = arith.mulf %24, %25 : vector<8x128xf32>
      %27 = arith.addf %23, %26 : vector<8x128xf32>
      %28 = vector.broadcast %22 : vector<1x128xf32> to vector<8x128xf32>
      %29 = arith.addf %27, %28 : vector<8x128xf32>
      %c0_29 = arith.constant 0 : index
      %c0_30 = arith.constant 0 : index
      %30 = vector.load %arg10[%c0_29, %c0_30] : memref<8x128xf32, #tpu.memory_space<vmem>>, vector<8x128xf32>
      tpu.vector_store %arg10[%c0_29, %c0_30], %29 {strides = array<i32>} : memref<8x128xf32, #tpu.memory_space<vmem>>, vector<8x128xf32>,
    } else {
    }
    return
  }
  func.func @transform_0(%arg0: i32, %arg1: i32, %arg2: i32) -> (i32, i32) {
    %c0_i32 = arith.constant 0 : i32
    return %arg0, %arg2 : i32, i32
  }
  func.func @transform_1(%arg0: i32, %arg1: i32, %arg2: i32) -> (i32, i32) {
    %c0_i32 = arith.constant 0 : i32
    return %arg0, %arg2 : i32, i32
  }
  func.func @transform_2(%arg0: i32, %arg1: i32, %arg2: i32) -> (i32, i32) {
    %c0_i32 = arith.constant 0 : i32
    return %arg2, %arg1 : i32, i32
  }
  func.func @transform_3(%arg0: i32, %arg1: i32, %arg2: i32) -> (i32, i32) {
    %c0_i32 = arith.constant 0 : i32
    return %arg2, %arg1 : i32, i32
  }
  func.func @transform_4(%arg0: i32, %arg1: i32, %arg2: i32) -> (i32, i32) {
    %c0_i32 = arith.constant 0 : i32
    %c0_i32_0 = arith.constant 0 : i32
    return %c0_i32, %arg1 : i32, i32
  }
  func.func @transform_5(%arg0: i32, %arg1: i32, %arg2: i32) -> (i32, i32) {
    %c0_i32 = arith.constant 0 : i32
    %c0_i32_0 = arith.constant 0 : i32
    return %c0_i32, %arg1 : i32, i32
  }
  func.func @transform_6(%arg0: i32, %arg1: i32, %arg2: i32) -> (i32, i32) {
    %c0_i32 = arith.constant 0 : i32
    %c0_i32_0 = arith.constant 0 : i32
    return %c0_i32, %arg1 : i32, i32
  }
  func.func @transform_7(%arg0: i32, %arg1: i32, %arg2: i32) -> (i32, i32) {
    %c0_i32 = arith.constant 0 : i32
    return %arg0, %arg1 : i32, i32
  }
}

</mosaic_0001>

<llo_original>
// kernel: noisy_linear_forward.1
$region0: #{noisy_linear_forward.1}
  #allocation0 [shape = 'u32[]', space=smem, size = 0x4, offset = 0x4, fixed_abs, tag = 'smem constant byte address 0x4 - core index']
  #allocation1 [shape = 'u32[72,128]{1,0:T(1,128)}', space=vmem, size = 0x9000, scoped, tag = 'internal scratch']
  #allocation2 [shape = 'f32[8,128]{1,0:T(8,128)}', space=vmem, size = 0x1000, scoped, tag = 'scratch operand']
  #allocation3 [shape = 'f32[8,128]{1,0:T(8,128)}', space=vmem, size = 0x1000, scoped, tag = 'scratch operand']
  %s0 = inlined_call_operand.vmem [shape: bf16[8,128], index: 0, kind: input, shape index: {}]
  %s1 = inlined_call_operand.vmem [shape: bf16[8,128], index: 1, kind: input, shape index: {}]
  %s2 = inlined_call_operand.hbm [shape: bf16[128,128], index: 2, kind: input, shape index: {}]
  %s3 = inlined_call_operand.hbm [shape: bf16[128,128], index: 3, kind: input, shape index: {}]
  %s4 = inlined_call_operand.vmem [shape: f32[1,128], index: 4, kind: input, shape index: {}]
  %s5 = inlined_call_operand.vmem [shape: f32[1,128], index: 5, kind: input, shape index: {}]
  %s6 = inlined_call_operand.vmem [shape: f32[1,128], index: 6, kind: input, shape index: {}]
  %s7 = inlined_call_operand.hbm [shape: f32[8,128], index: 7, kind: output, shape index: {}]
  %s8 = sld [smem:[#allocation0]]
  $region54: #{noisy_linear_forward.1} parent=0
    _
  %s10 = ssub.s32 1, %s8
  %s11 = scalar_select 0, %s10, %s8
  $region1: #{noisy_linear_forward.1} parent=0
    #allocation4 [shape = 'u8[32768]{0}', space=vmem, size = 0x8000, scoped, tag = 'input window, operand 2, single buffered']
    #allocation5 [shape = 's32[1]{0}', space=sflag, size = 0x4, scoped, tag = 'scoped memory for noisy_linear_forward.1']
    #allocation6 [shape = 's32[1]{0}', space=sflag, size = 0x4, scoped, tag = 'scoped memory for noisy_linear_forward.1']
    #allocation7 [shape = 'u8[32768]{0}', space=vmem, size = 0x8000, scoped, tag = 'input window, operand 3, single buffered']
    #allocation8 [shape = 's32[1]{0}', space=sflag, size = 0x4, scoped, tag = 'scoped memory for noisy_linear_forward.1']
    #allocation9 [shape = 'u8[4096]{0}', space=vmem, size = 0x1000, scoped, tag = 'output window, operand 0, single buffered']
    %12 = vsyncpa [#allocation5], 0
    %13 = vsyncpa [#allocation8], 0
    %14 = vsyncpa [#allocation6], 0
    // Predicated region
    $region2: #{noisy_linear_forward.1} parent=1 // pred_check
      _
    $region3: #{noisy_linear_forward.1} parent=1 // pred_check_branch
      %16 = sbr.rel (0) target = $region5
    $region4: #{noisy_linear_forward.1} parent=1 // pred_region
      _
    $region5: #{noisy_linear_forward.1} parent=1 // pred_fallthru
      _
    // Predicated region
    $region6: #{noisy_linear_forward.1} parent=1 // pred_check
      _
    $region7: #{noisy_linear_forward.1} parent=1 // pred_check_branch
      %18 = sbr.rel (0) target = $region9
    $region8: #{noisy_linear_forward.1} parent=1 // pred_region
      _
    $region9: #{noisy_linear_forward.1} parent=1 // pred_fallthru
      _
    // Predicated region
    $region10: #{noisy_linear_forward.1} parent=1 // pred_check
      _
    $region11: #{noisy_linear_forward.1} parent=1 // pred_check_branch
      %20 = sbr.rel (0) target = $region13
    $region12: #{noisy_linear_forward.1} parent=1 // pred_region
      %22 = vsyncadd [#allocation5], 0
      %s23 = sshll.u32 %s2, 4
      %s24 = int_to_ptr.hbm [resolvable:$true] %s23
      %s25 = sshll.u32 [#allocation4], 4
      %s26 = int_to_ptr.vmem [resolvable:$true] %s25
      %31 = dma.hbm_to_vmem [thread:$0]  %s24, 1024, %s26, [#allocation5], 64, 64, 4
    $region13: #{noisy_linear_forward.1} parent=1 // pred_fallthru
      _
    // Predicated region
    $region14: #{noisy_linear_forward.1} parent=1 // pred_check
      _
    $region15: #{noisy_linear_forward.1} parent=1 // pred_check_branch
      %33 = sbr.rel (0) target = $region17
    $region16: #{noisy_linear_forward.1} parent=1 // pred_region
      %35 = vsyncadd [#allocation8], 0
      %s36 = sshll.u32 %s3, 4
      %s37 = int_to_ptr.hbm [resolvable:$true] %s36
      %s38 = sshll.u32 [#allocation7], 4
      %s39 = int_to_ptr.vmem [resolvable:$true] %s38
      %44 = dma.hbm_to_vmem [thread:$0]  %s37, 1024, %s39, [#allocation8], 64, 64, 4
    $region17: #{noisy_linear_forward.1} parent=1 // pred_fallthru
      _
    // Predicated region
    $region18: #{noisy_linear_forward.1} parent=1 // pred_check
      _
    $region19: #{noisy_linear_forward.1} parent=1 // pred_check_branch
      %46 = sbr.rel (0) target = $region21
    $region20: #{noisy_linear_forward.1} parent=1 // pred_region
      _
    $region21: #{noisy_linear_forward.1} parent=1 // pred_fallthru
      _
    // Predicated region
    $region22: #{noisy_linear_forward.1} parent=1 // pred_check
      _
    $region23: #{noisy_linear_forward.1} parent=1 // pred_check_branch
      %48 = sbr.rel (0) target = $region25
    $region24: #{noisy_linear_forward.1} parent=1 // pred_region
      _
    $region25: #{noisy_linear_forward.1} parent=1 // pred_fallthru
      _
    // Predicated region
    $region26: #{noisy_linear_forward.1} parent=1 // pred_check
      _
    $region27: #{noisy_linear_forward.1} parent=1 // pred_check_branch
      %50 = sbr.rel (0) target = $region29
    $region28: #{noisy_linear_forward.1} parent=1 // pred_region
      _
    $region29: #{noisy_linear_forward.1} parent=1 // pred_fallthru
      _
    // Predicated region
    $region30: #{noisy_linear_forward.1} parent=1 // pred_check
      _
    $region31: #{noisy_linear_forward.1} parent=1 // pred_check_branch
      %52 = sbr.rel (0) target = $region33
    $region32: #{noisy_linear_forward.1} parent=1 // pred_region
      %54 = dma.done [#allocation5], 1024
    $region33: #{noisy_linear_forward.1} parent=1 // pred_fallthru
      _
    // Predicated region
    $region34: #{noisy_linear_forward.1} parent=1 // pred_check
      _
    $region35: #{noisy_linear_forward.1} parent=1 // pred_check_branch
      %56 = sbr.rel (0) target = $region37
    $region36: #{noisy_linear_forward.1} parent=1 // pred_region
      %58 = dma.done [#allocation8], 1024
    $region37: #{noisy_linear_forward.1} parent=1 // pred_fallthru
      _
    %p59 = scmp.eq.s32.totalorder 0, 0
    // Predicated region
    $region38: #{noisy_linear_forward.1} parent=1 // pred_check
      %p60 = pneg %p59
    $region39: #{noisy_linear_forward.1} parent=1 // pred_check_branch
      %62 = sbr.rel (%p60) target = $region41
    $region40: #{noisy_linear_forward.1} parent=1 // pred_region
      %63 = vst [vmem:[#allocation2] sm:$0xff] 0.0
      %64 = vst [vmem:[#allocation3] sm:$0xff] 0.0
    $region41: #{noisy_linear_forward.1} parent=1 // pred_fallthru
      _
    %v65 = vld [vmem:[#allocation2] sm:$0xff]
    %v66 = vld [vmem:[%s0] sm:$0xf]
    %v67 = vld [vmem:[#allocation4] sm:$0xf]
    %v68 = vld [vmem:[#allocation4 + $0x4] sm:$0xf]
    %v69 = vld [vmem:[#allocation4 + $0x8] sm:$0xf]
    %v70 = vld [vmem:[#allocation4 + $0xc] sm:$0xf]
    %v71 = vld [vmem:[#allocation4 + $0x10] sm:$0xf]
    %v72 = vld [vmem:[#allocation4 + $0x14] sm:$0xf]
    %v73 = vld [vmem:[#allocation4 + $0x18] sm:$0xf]
    %v74 = vld [vmem:[#allocation4 + $0x1c] sm:$0xf]
    %v75 = vld [vmem:[#allocation4 + $0x20] sm:$0xf]
    %v76 = vld [vmem:[#allocation4 + $0x24] sm:$0xf]
    %v77 = vld [vmem:[#allocation4 + $0x28] sm:$0xf]
    %v78 = vld [vmem:[#allocation4 + $0x2c] sm:$0xf]
    %v79 = vld [vmem:[#allocation4 + $0x30] sm:$0xf]
    %v80 = vld [vmem:[#allocation4 + $0x34] sm:$0xf]
    %v81 = vld [vmem:[#allocation4 + $0x38] sm:$0xf]
    %v82 = vld [vmem:[#allocation4 + $0x3c] sm:$0xf]
    %v99 = vunpack.c.l.b16 %v67
    %v100 = vunpack.c.l.b16 %v68
    %v101 = vunpack.c.l.b16 %v69
    %v102 = vunpack.c.l.b16 %v70
    %v103 = vunpack.c.l.b16 %v71
    %v104 = vunpack.c.l.b16 %v72
    %v105 = vunpack.c.l.b16 %v73
    %v106 = vunpack.c.l.b16 %v74
    %v107 = vunpack.c.l.b16 %v75
    %v108 = vunpack.c.l.b16 %v76
    %v109 = vunpack.c.l.b16 %v77
    %v110 = vunpack.c.l.b16 %v78
    %v111 = vunpack.c.l.b16 %v79
    %v112 = vunpack.c.l.b16 %v80
    %v113 = vunpack.c.l.b16 %v81
    %v114 = vunpack.c.l.b16 %v82
    %v115 = vpack.c.b16 %v100, %v99
    %v116 = vpack.c.b16 %v102, %v101
    %v117 = vpack.c.b16 %v104, %v103
    %v118 = vpack.c.b16 %v106, %v105
    %v119 = vpack.c.b16 %v108, %v107
    %v120 = vpack.c.b16 %v110, %v109
    %v121 = vpack.c.b16 %v112, %v111
    %v122 = vpack.c.b16 %v114, %v113
    %131 = vmatpush.bf16.msra.mxu0 %v122
    %132 = vmatpush.bf16.msra.mxu0 %v121
    %133 = vmatpush.bf16.msra.mxu0 %v120
    %134 = vmatpush.bf16.msra.mxu0 %v119
    %135 = vmatpush.bf16.msra.mxu0 %v118
    %136 = vmatpush.bf16.msra.mxu0 %v117
    %137 = vmatpush.bf16.msra.mxu0 %v116
    %138 = vmatpush.bf16.msra.mxu0 %v115
    %139 = vmatmul.bf16.gmra.mxu0 %v66
    %v140 = vpop.f32.mrf.mxu0
    %v141 = vadd.f32 0.0, %v140
    %v142 = vpop.f32.mrf.mxu0
    %143 = vdwg.mxu0
    %v144 = vadd.f32 %v65, %v141
    %145 = vst [vmem:[#allocation2] sm:$0xff] %v144
    %v146 = vld [vmem:[#allocation3] sm:$0xff]
    %v147 = vld [vmem:[%s1] sm:$0xf]
    %v148 = vld [vmem:[#allocation7] sm:$0xf]
    %v149 = vld [vmem:[#allocation7 + $0x4] sm:$0xf]
    %v150 = vld [vmem:[#allocation7 + $0x8] sm:$0xf]
    %v151 = vld [vmem:[#allocation7 + $0xc] sm:$0xf]
    %v152 = vld [vmem:[#allocation7 + $0x10] sm:$0xf]
    %v153 = vld [vmem:[#allocation7 + $0x14] sm:$0xf]
    %v154 = vld [vmem:[#allocation7 + $0x18] sm:$0xf]
    %v155 = vld [vmem:[#allocation7 + $0x1c] sm:$0xf]
    %v156 = vld [vmem:[#allocation7 + $0x20] sm:$0xf]
    %v157 = vld [vmem:[#allocation7 + $0x24] sm:$0xf]
    %v158 = vld [vmem:[#allocation7 + $0x28] sm:$0xf]
    %v159 = vld [vmem:[#allocation7 + $0x2c] sm:$0xf]
    %v160 = vld [vmem:[#allocation7 + $0x30] sm:$0xf]
    %v161 = vld [vmem:[#allocation7 + $0x34] sm:$0xf]
    %v162 = vld [vmem:[#allocation7 + $0x38] sm:$0xf]
    %v163 = vld [vmem:[#allocation7 + $0x3c] sm:$0xf]
    %v180 = vunpack.c.l.b16 %v148
    %v181 = vunpack.c.l.b16 %v149
    %v182 = vunpack.c.l.b16 %v150
    %v183 = vunpack.c.l.b16 %v151
    %v184 = vunpack.c.l.b16 %v152
    %v185 = vunpack.c.l.b16 %v153
    %v186 = vunpack.c.l.b16 %v154
    %v187 = vunpack.c.l.b16 %v155
    %v188 = vunpack.c.l.b16 %v156
    %v189 = vunpack.c.l.b16 %v157
    %v190 = vunpack.c.l.b16 %v158
    %v191 = vunpack.c.l.b16 %v159
    %v192 = vunpack.c.l.b16 %v160
    %v193 = vunpack.c.l.b16 %v161
    %v194 = vunpack.c.l.b16 %v162
    %v195 = vunpack.c.l.b16 %v163
    %v196 = vpack.c.b16 %v181, %v180
    %v197 = vpack.c.b16 %v183, %v182
    %v198 = vpack.c.b16 %v185, %v184
    %v199 = vpack.c.b16 %v187, %v186
    %v200 = vpack.c.b16 %v189, %v188
    %v201 = vpack.c.b16 %v191, %v190
    %v202 = vpack.c.b16 %v193, %v192
    %v203 = vpack.c.b16 %v195, %v194
    %212 = vmatpush.bf16.msra.mxu0 %v203
    %213 = vmatpush.bf16.msra.mxu0 %v202
    %214 = vmatpush.bf16.msra.mxu0 %v201
    %215 = vmatpush.bf16.msra.mxu0 %v200
    %216 = vmatpush.bf16.msra.mxu0 %v199
    %217 = vmatpush.bf16.msra.mxu0 %v198
    %218 = vmatpush.bf16.msra.mxu0 %v197
    %219 = vmatpush.bf16.msra.mxu0 %v196
    %220 = vmatmul.bf16.gmra.mxu0 %v147
    %v221 = vpop.f32.mrf.mxu0
    %v222 = vadd.f32 0.0, %v221
    %v223 = vpop.f32.mrf.mxu0
    %224 = vdwg.mxu0
    %v225 = vadd.f32 %v146, %v222
    %226 = vst [vmem:[#allocation3] sm:$0xff] %v225
    // Predicated region
    $region42: #{noisy_linear_forward.1} parent=1 // pred_check
      %p227 = pneg %p59
    $region43: #{noisy_linear_forward.1} parent=1 // pred_check_branch
      %229 = sbr.rel (%p227) target = $region45
    $region44: #{noisy_linear_forward.1} parent=1 // pred_region
      %v230 = vld [vmem:[%s4] sm:$0x1]
      %v231 = vld [vmem:[%s5] sm:$0x1]
      %v232 = vld [vmem:[%s6] sm:$0x1]
      %v233 = vmul.f32 %v232, %v230
      %v234 = vadd.f32 %v231, %v233
      %v235 = vld [vmem:[#allocation2] sm:$0xff]
      %v236 = vld [vmem:[#allocation3] sm:$0xff]
      %v238 = vperm.slane %v230, 0
      %v240 = vmul.f32 %v236, %v238
      %v241 = vadd.f32 %v235, %v240
      %v243 = vperm.slane %v234, 0
      %v245 = vadd.f32 %v241, %v243
      %246 = vst [vmem:[#allocation9] sm:$0xff] %v245
    $region45: #{noisy_linear_forward.1} parent=1 // pred_fallthru
      _
    // Predicated region
    $region46: #{noisy_linear_forward.1} parent=1 // pred_check
      _
    $region47: #{noisy_linear_forward.1} parent=1 // pred_check_branch
      %248 = sbr.rel (0) target = $region49
    $region48: #{noisy_linear_forward.1} parent=1 // pred_region
      %250 = vsyncadd [#allocation6], 0
      %s252 = sshll.u32 [#allocation9], 4
      %s253 = int_to_ptr.vmem [resolvable:$true] %s252
      %s254 = sshll.u32 %s7, 4
      %s255 = int_to_ptr.hbm [resolvable:$true] %s254
      %257 = dma.vmem_to_hbm [thread:$0]  %s253, 128, %s255, [#allocation6]
    $region49: #{noisy_linear_forward.1} parent=1 // pred_fallthru
      _
    // Predicated region
    $region50: #{noisy_linear_forward.1} parent=1 // pred_check
      _
    $region51: #{noisy_linear_forward.1} parent=1 // pred_check_branch
      %259 = sbr.rel (0) target = $region53
    $region52: #{noisy_linear_forward.1} parent=1 // pred_region
      %261 = dma.done [#allocation6], 128
    $region53: #{noisy_linear_forward.1} parent=1 // pred_fallthru
      _
    %262 = vsyncpa [#allocation5], 1
    %263 = vsyncpa [#allocation8], 1
    %264 = vsyncpa [#allocation6], 1

</llo_original>
